<compile_context>
chip_gen: v6e
topology: v6e:2x2x1
jax: 0.10.0
libtpu: 0.0.40
codegen_flags: <defaults>
</compile_context>

<pallas_src>
import functools

import jax
import jax.numpy as jnp
from jax.experimental import pallas as pl
from jax.experimental.pallas import tpu as pltpu


def _round_up(x, m):
    return (x + m - 1) // m * m


def _num_tensorcores():
    """Best-effort TensorCore count (1 on v5e/v6e, 2 on v7x)."""
    try:
        info = pltpu.get_tpu_info()
        for name in ("num_cores", "num_tensorcores", "num_tensor_cores",
                     "tensor_cores_per_chip", "cores_per_chip", "core_count"):
            v = getattr(info, name, None)
            if isinstance(v, int) and v > 0:
                return v
    except Exception:
        pass
    return 1


def _wcl_kernel(dist_ref, xor_ref, out_ref, *, margin, half_pos, half_neg,
                tiles_per_split, tm, n_rows, needs_mask):
    c = pl.program_id(0)   # row-range split (one per TensorCore on v7x)
    i = pl.program_id(1)   # row tiles within the split (reduction axis)

    @pl.when(i == 0)
    def _():
        out_ref[...] = jnp.zeros_like(out_ref)

    d = dist_ref[...].astype(jnp.float32)
    xor = xor_ref[...]
    hinge = jnp.maximum(jnp.float32(margin) - d, 0.0)
    # label = ~xor  =>  pos term active where xor is True, neg where it's False.
    # Fused form: loss = 0.5*w * t*t with (w, t) selected per element.
    t = jnp.where(xor, d, hinge)
    w = jnp.where(xor, jnp.float32(half_pos), jnp.float32(half_neg))
    loss = w * (t * t)

    n = loss.shape[-1]

    def accumulate(x):
        # (tm, N) -> (8, N) partial sums: pure VPU adds of whole vregs, no XLU.
        out_ref[...] += x.reshape(tm // 8, 8, n).sum(axis=0)

    if needs_mask:
        # Only the tail tile and phantom tiles (over-coverage from the core
        # split) need masking; interior tiles take the unmasked fast path.
        tile = c * tiles_per_split + i          # unclamped logical tile id
        is_edge = (tile + 1) * tm > n_rows

        @pl.when(jnp.logical_not(is_edge))
        def _():
            accumulate(loss)

        @pl.when(is_edge)
        def _():
            rows = tile * tm + jax.lax.broadcasted_iota(jnp.int32, loss.shape, 0)
            # Keep this a select (not a multiplicative zero): padded rows may
            # hold garbage and garbage*0 can produce NaN.
            accumulate(jnp.where(rows < n_rows, loss, 0.0))
    else:
        accumulate(loss)


def weighted_contrastive_loss(distance, xor_dists, *, margin=1.0,
                              pos_weight=1.0, neg_weight=1.0,
                              target_step_bytes=3 << 20, num_splits=None):
    """distance: f32/bf16[M, N]; xor_dists: bool[M, N]. Returns scalar f32 mean."""
    M, N = distance.shape
    total = M * N

    # Lane-dense view: if the last dim is not a multiple of 128 but the total
    # element count is, stream a free row-major reshape to (total/128, 128)
    # so every vreg load/store uses all 128 lanes unmasked.
    if N % 128 != 0 and total % 128 == 0:
        distance = distance.reshape(total // 128, 128)
        xor_dists = xor_dists.reshape(total // 128, 128)
    Mr, Nr = distance.shape

    if num_splits is None:
        num_splits = _num_tensorcores()

    # N-aware row tile: per-step input footprint ~ target_step_bytes.
    # Multiple of 32 rows so the 1-byte bool tile constraint (32, 128) holds
    # (f32 only needs 8); clamped to the rounded-up row count.
    bytes_per_row = Nr * (distance.dtype.itemsize + xor_dists.dtype.itemsize)
    tm_eff = max(32, (int(target_step_bytes) // max(bytes_per_row, 1)) // 32 * 32)
    tm_eff = min(tm_eff, _round_up(Mr, 32))
    # TODO(synk): for very wide Nr (a single 32-row step exceeding the VMEM
    # cap) add a column tile as a third grid axis instead of a huge row tile.

    num_tiles = pl.cdiv(Mr, tm_eff)
    num_splits = max(1, min(int(num_splits), num_tiles))
    tiles_per_split = pl.cdiv(num_tiles, num_splits)
    # Mask only needed if the (split, tile) iteration space over-covers Mr.
    needs_mask = (num_splits * tiles_per_split * tm_eff) != Mr

    def in_map(c, i):
        # Clamp so every DMA stays in-bounds; over-covered rows are masked
        # inside the kernel using the unclamped logical tile index.
        return (jnp.minimum(c * tiles_per_split + i, num_tiles - 1), 0)

    kernel = functools.partial(
        _wcl_kernel,
        margin=float(margin),
        half_pos=0.5 * float(pos_weight),
        half_neg=0.5 * float(neg_weight),
        tiles_per_split=tiles_per_split, tm=tm_eff, n_rows=Mr,
        needs_mask=needs_mask)

    partial_sums = pl.pallas_call(
        kernel,
        out_shape=jax.ShapeDtypeStruct((num_splits * 8, Nr), jnp.float32),
        grid_spec=pltpu.PrefetchScalarGridSpec(
            num_scalar_prefetch=0,
            grid=(num_splits, tiles_per_split),
            in_specs=[
                pl.BlockSpec((tm_eff, Nr), in_map),   # distance
                pl.BlockSpec((tm_eff, Nr), in_map),   # xor_dists (bool, 1 B/elem)
            ],
            out_specs=pl.BlockSpec((8, Nr), lambda c, i: (c, 0)),
        ),
        compiler_params=pltpu.CompilerParams(
            # TODO(synk): on v7x verify both splits land on separate TCs in
            # xprof; if serialized, switch the leading axis to CORE_PARALLEL.
            dimension_semantics=("parallel", "arbitrary"),
            vmem_limit_bytes=32 * 1024 * 1024),
    )(distance, xor_dists)

    # Single tiny cross-lane reduce + mean, outside the hot loop.
    return jnp.sum(partial_sums) / jnp.float32(total)


def _reference(distance, xor_dists, margin=1.0, pos_weight=1.0, neg_weight=1.0):
    label = (~xor_dists).astype(jnp.float32)
    d = distance.astype(jnp.float32)
    pos = pos_weight * (1.0 - label) * 0.5 * d ** 2
    neg = neg_weight * label * 0.5 * jnp.clip(margin - d, 0.0) ** 2
    return jnp.mean(pos + neg)


if __name__ == "__main__":
    key = jax.random.PRNGKey(0)
    k1, k2, k3, k4 = jax.random.split(key, 4)
    margin, pos_w, neg_w = 1.0, 1.5, 0.75

    # Case 1: lane-aligned, ragged row count (exercises the tail-mask path).
    d1 = jax.random.uniform(k1, (40, 128), jnp.float32, 0.0, 2.0)
    x1 = jax.random.bernoulli(k2, 0.5, (40, 128))   # bool tensor

    # Case 2: narrow last dim (exercises the lane-dense flatten path).
    d2 = jax.random.uniform(k3, (16, 48), jnp.float32, 0.0, 2.0)
    x2 = jax.random.bernoulli(k4, 0.5, (16, 48))

    for d, x in ((d1, x1), (d2, x2)):
        loss = weighted_contrastive_loss(d, x, margin=margin,
                                         pos_weight=pos_w, neg_weight=neg_w)
        loss = jax.block_until_ready(loss)
        ref = _reference(d, x, margin, pos_w, neg_w)
        assert jnp.allclose(loss, ref, rtol=1e-5, atol=1e-6), (loss, ref)

    print("KERNEL_OK")
</pallas_src>

<mosaic_0001>
module attributes {stable_mosaic.version = 11 : i64} {
  func.func @_wcl_kernel(%arg0: i32, %arg1: i32, %arg2: memref<64x128xf32, #tpu.memory_space<vmem>>, %arg3: memref<64x128xi32, #tpu.memory_space<vmem>>, %arg4: memref<8x128xf32, #tpu.memory_space<vmem>>) attributes {dimension_semantics = [#tpu.dimension_semantics<parallel>, #tpu.dimension_semantics<arbitrary>], iteration_bounds = array<i64: 1, 1>, scalar_prefetch = 0 : i64, scratch_operands = 0 : i64, tpu.core_type = #tpu.core_type<tc>, window_params = [{transform_indices = @transform_0, window_bounds = array<i64: 64, 128>}, {transform_indices = @transform_1, window_bounds = array<i64: 64, 128>}, {transform_indices = @transform_2, window_bounds = array<i64: 8, 128>}]} {
    %c0_i32 = arith.constant 0 : i32
    %0 = arith.cmpi eq, %arg1, %c0_i32 : i32
    %1 = arith.extui %0 : i1 to i32
    %c0_i32_0 = arith.constant 0 : i32
    %2 = arith.cmpi ne, %1, %c0_i32_0 : i32
    scf.if %2 {
      %cst_11 = arith.constant 0.000000e+00 : f32
      %26 = vector.broadcast %cst_11 : f32 to vector<8x128xf32>
      %c0_12 = arith.constant 0 : index
      %c0_13 = arith.constant 0 : index
      %27 = vector.load %arg4[%c0_12, %c0_13] : memref<8x128xf32, #tpu.memory_space<vmem>>, vector<8x128xf32>
      tpu.vector_store %arg4[%c0_12, %c0_13], %26 {strides = array<i32>} : memref<8x128xf32, #tpu.memory_space<vmem>>, vector<8x128xf32>,
    } else {
    }
    %c0 = arith.constant 0 : index
    %c0_1 = arith.constant 0 : index
    %3 = vector.load %arg2[%c0, %c0_1] : memref<64x128xf32, #tpu.memory_space<vmem>>, vector<64x128xf32>
    %c0_2 = arith.constant 0 : index
    %c0_3 = arith.constant 0 : index
    %4 = vector.load %arg3[%c0_2, %c0_3] : memref<64x128xi32, #tpu.memory_space<vmem>>, vector<64x128xi32>
    %cst = arith.constant dense<0> : vector<64x128xi32>
    %5 = arith.cmpi ne, %4, %cst : vector<64x128xi32>
    %cst_4 = arith.constant 1.000000e+00 : f32
    %6 = vector.broadcast %cst_4 : f32 to vector<64x128xf32>
    %7 = arith.subf %6, %3 : vector<64x128xf32>
    %cst_5 = arith.constant 0.000000e+00 : f32
    %8 = vector.broadcast %cst_5 : f32 to vector<64x128xf32>
    %9 = arith.maximumf %7, %8 : vector<64x128xf32>
    %10 = arith.select %5, %3, %9 : vector<64x128xi1>, vector<64x128xf32>
    %cst_6 = arith.constant 7.500000e-01 : f32
    %cst_7 = arith.constant 3.750000e-01 : f32
    %11 = vector.broadcast %cst_6 : f32 to vector<64x128xf32>
    %12 = vector.broadcast %cst_7 : f32 to vector<64x128xf32>
    %13 = arith.select %5, %11, %12 : vector<64x128xi1>, vector<64x128xf32>
    %14 = arith.mulf %10, %10 : vector<64x128xf32>
    %15 = arith.mulf %13, %14 : vector<64x128xf32>
    %c1_i32 = arith.constant 1 : i32
    %16 = arith.muli %arg0, %c1_i32 : i32
    %17 = arith.addi %16, %arg1 : i32
    %c1_i32_8 = arith.constant 1 : i32
    %18 = arith.addi %17, %c1_i32_8 : i32
    %c64_i32 = arith.constant 64 : i32
    %19 = arith.muli %18, %c64_i32 : i32
    %c40_i32 = arith.constant 40 : i32
    %20 = arith.cmpi sgt, %19, %c40_i32 : i32
    %true = arith.constant true
    %21 = arith.xori %20, %true : i1
    %22 = arith.extui %21 : i1 to i32
    %c0_i32_9 = arith.constant 0 : i32
    %23 = arith.cmpi ne, %22, %c0_i32_9 : i32
    scf.if %23 {
      %c0_11 = arith.constant 0 : index
      %c0_12 = arith.constant 0 : index
      %26 = vector.load %arg4[%c0_11, %c0_12] : memref<8x128xf32, #tpu.memory_space<vmem>>, vector<8x128xf32>
      %27 = vector.shape_cast %15 : vector<64x128xf32> to vector<8x8x128xf32>
      %cst_13 = arith.constant dense<0.000000e+00> : vector<8x128xf32>
      %28 = vector.multi_reduction <add>, %27, %cst_13 [0] : vector<8x8x128xf32> to vector<8x128xf32>
      %29 = arith.addf %26, %28 : vector<8x128xf32>
      %c0_14 = arith.constant 0 : index
      %c0_15 = arith.constant 0 : index
      %30 = vector.load %arg4[%c0_14, %c0_15] : memref<8x128xf32, #tpu.memory_space<vmem>>, vector<8x128xf32>
      tpu.vector_store %arg4[%c0_14, %c0_15], %29 {strides = array<i32>} : memref<8x128xf32, #tpu.memory_space<vmem>>, vector<8x128xf32>,
    } else {
    }
    %24 = arith.extui %20 : i1 to i32
    %c0_i32_10 = arith.constant 0 : i32
    %25 = arith.cmpi ne, %24, %c0_i32_10 : i32
    scf.if %25 {
      %c64_i32_11 = arith.constant 64 : i32
      %26 = arith.muli %17, %c64_i32_11 : i32
      %27 = tpu.iota {dimensions = array<i32: 0>} : vector<64x128xi32>
      %28 = vector.broadcast %26 : i32 to vector<64x128xi32>
      %29 = arith.addi %28, %27 : vector<64x128xi32>
      %c40_i32_12 = arith.constant 40 : i32
      %30 = vector.broadcast %c40_i32_12 : i32 to vector<64x128xi32>
      %31 = arith.cmpi slt, %29, %30 : vector<64x128xi32>
      %cst_13 = arith.constant 0.000000e+00 : f32
      %32 = vector.broadcast %cst_13 : f32 to vector<64x128xf32>
      %33 = arith.select %31, %15, %32 : vector<64x128xi1>, vector<64x128xf32>
      %c0_14 = arith.constant 0 : index
      %c0_15 = arith.constant 0 : index
      %34 = vector.load %arg4[%c0_14, %c0_15] : memref<8x128xf32, #tpu.memory_space<vmem>>, vector<8x128xf32>
      %35 = vector.shape_cast %33 : vector<64x128xf32> to vector<8x8x128xf32>
      %cst_16 = arith.constant dense<0.000000e+00> : vector<8x128xf32>
      %36 = vector.multi_reduction <add>, %35, %cst_16 [0] : vector<8x8x128xf32> to vector<8x128xf32>
      %37 = arith.addf %34, %36 : vector<8x128xf32>
      %c0_17 = arith.constant 0 : index
      %c0_18 = arith.constant 0 : index
      %38 = vector.load %arg4[%c0_17, %c0_18] : memref<8x128xf32, #tpu.memory_space<vmem>>, vector<8x128xf32>
      tpu.vector_store %arg4[%c0_17, %c0_18], %37 {strides = array<i32>} : memref<8x128xf32, #tpu.memory_space<vmem>>, vector<8x128xf32>,
    } else {
    }
    return
  }
  func.func @transform_0(%arg0: i32, %arg1: i32) -> (i32, i32) {
    %c1_i32 = arith.constant 1 : i32
    %0 = arith.muli %arg0, %c1_i32 : i32
    %1 = arith.addi %0, %arg1 : i32
    %c0_i32 = arith.constant 0 : i32
    %2 = arith.minsi %1, %c0_i32 : i32
    %c0_i32_0 = arith.constant 0 : i32
    %c0_i32_1 = arith.constant 0 : i32
    return %2, %c0_i32_0 : i32, i32
  }
  func.func @transform_1(%arg0: i32, %arg1: i32) -> (i32, i32) {
    %c1_i32 = arith.constant 1 : i32
    %0 = arith.muli %arg0, %c1_i32 : i32
    %1 = arith.addi %0, %arg1 : i32
    %c0_i32 = arith.constant 0 : i32
    %2 = arith.minsi %1, %c0_i32 : i32
    %c0_i32_0 = arith.constant 0 : i32
    %c0_i32_1 = arith.constant 0 : i32
    return %2, %c0_i32_0 : i32, i32
  }
  func.func @transform_2(%arg0: i32, %arg1: i32) -> (i32, i32) {
    %c0_i32 = arith.constant 0 : i32
    %c0_i32_0 = arith.constant 0 : i32
    return %arg0, %c0_i32 : i32, i32
  }
}

</mosaic_0001>

<llo_original>
// kernel: tpu_custom_call.1
$region0: #{tpu_custom_call.1}
  #allocation0 [shape = 'u32[]', space=smem, size = 0x4, offset = 0x4, fixed_abs, tag = 'smem constant byte address 0x4 - core index']
  #allocation1 [shape = 'u32[144,128]{1,0:T(1,128)}', space=vmem, size = 0x12000, scoped, tag = 'internal scratch']
  %s0 = inlined_call_operand.vmem [shape: f32[40,128], index: 0, kind: input, shape index: {}]
  %s1 = inlined_call_operand.vmem [shape: s32[40,128], index: 1, kind: input, shape index: {}]
  %s2 = inlined_call_operand.hbm [shape: f32[8,128], index: 2, kind: output, shape index: {}]
  %s3 = sld [smem:[#allocation0]]
  $region30: #{tpu_custom_call.1} parent=0
    _
  %s5 = ssub.s32 1, %s3
  %s6 = scalar_select 0, %s5, %s3
  $region1: #{tpu_custom_call.1} parent=0
    #allocation2 [shape = 'u8[4096]{0}', space=vmem, size = 0x1000, scoped, tag = 'output window, operand 0, single buffered']
    #allocation3 [shape = 's32[1]{0}', space=sflag, size = 0x4, scoped, tag = 'scoped memory for tpu_custom_call.1']
    %7 = vsyncpa [#allocation3], 0
    // Predicated region
    $region2: #{tpu_custom_call.1} parent=1 // pred_check
      _
    $region3: #{tpu_custom_call.1} parent=1 // pred_check_branch
      %9 = sbr.rel (0) target = $region5
    $region4: #{tpu_custom_call.1} parent=1 // pred_region
      %s10 = sadd.s32 0, 0
      %p11 = scmp.lt.s32.totalorder %s10, 0
      %s12 = scalar_select %p11, %s10, 0
      %s13 = smul.u32 8, %s12
      %s14 = ssub.s32 5, %s13
      %s15 = smul.u32 128, %s14
      %p16 = scmp.lt.s32.totalorder %s13, 4
      %s17 = scalar_select %p16, %s13, 4
      %s18 = smul.addr %s17, 8
      %s19 = scalar_lea.vmem %s0, %s18
      %s20 = sadd.s32 0, 0
      %p21 = scmp.lt.s32.totalorder %s20, 0
      %s22 = scalar_select %p21, %s20, 0
      %s23 = smul.u32 8, %s22
      %s24 = ssub.s32 5, %s23
      %s25 = smul.u32 128, %s24
    $region5: #{tpu_custom_call.1} parent=1 // pred_fallthru
      _
    // Predicated region
    $region6: #{tpu_custom_call.1} parent=1 // pred_check
      _
    $region7: #{tpu_custom_call.1} parent=1 // pred_check_branch
      %27 = sbr.rel (0) target = $region9
    $region8: #{tpu_custom_call.1} parent=1 // pred_region
      %s28 = sadd.s32 0, 0
      %p29 = scmp.lt.s32.totalorder %s28, 0
      %s30 = scalar_select %p29, %s28, 0
      %s31 = smul.u32 8, %s30
      %s32 = ssub.s32 5, %s31
      %s33 = smul.u32 128, %s32
      %p34 = scmp.lt.s32.totalorder %s31, 4
      %s35 = scalar_select %p34, %s31, 4
      %s36 = smul.addr %s35, 8
      %s37 = scalar_lea.vmem %s1, %s36
      %s38 = sadd.s32 0, 0
      %p39 = scmp.lt.s32.totalorder %s38, 0
      %s40 = scalar_select %p39, %s38, 0
      %s41 = smul.u32 8, %s40
      %s42 = ssub.s32 5, %s41
      %s43 = smul.u32 128, %s42
    $region9: #{tpu_custom_call.1} parent=1 // pred_fallthru
      _
    %s44 = sadd.s32 0, 0
    %p45 = scmp.lt.s32.totalorder %s44, 0
    %s46 = scalar_select %p45, %s44, 0
    %s47 = smul.u32 8, %s46
    %s48 = ssub.s32 5, %s47
    %s49 = smul.u32 128, %s48
    %p50 = scmp.lt.s32.totalorder %s47, 4
    %s51 = scalar_select %p50, %s47, 4
    %s52 = smul.addr %s51, 8
    %s53 = scalar_lea.vmem %s0, %s52
    %s54 = sadd.s32 0, 0
    %p55 = scmp.lt.s32.totalorder %s54, 0
    %s56 = scalar_select %p55, %s54, 0
    %s57 = smul.u32 8, %s56
    %s58 = ssub.s32 5, %s57
    %s59 = smul.u32 128, %s58
    %p60 = scmp.lt.s32.totalorder %s57, 4
    %s61 = scalar_select %p60, %s57, 4
    %s62 = smul.addr %s61, 8
    %s63 = scalar_lea.vmem %s1, %s62
    %s64 = sadd.s32 0, 0
    %p65 = scmp.lt.s32.totalorder %s64, 0
    %s66 = scalar_select %p65, %s64, 0
    %s67 = smul.u32 8, %s66
    %s68 = ssub.s32 5, %s67
    %s69 = smul.u32 128, %s68
    %p70 = scmp.lt.s32.totalorder %s67, 4
    %s71 = scalar_select %p70, %s67, 4
    %s72 = smul.addr %s71, 8
    %s73 = scalar_lea.vmem %s0, %s72
    %s74 = sadd.s32 0, 0
    %p75 = scmp.lt.s32.totalorder %s74, 0
    %s76 = scalar_select %p75, %s74, 0
    %s77 = smul.u32 8, %s76
    %s78 = ssub.s32 5, %s77
    %s79 = smul.u32 128, %s78
    %s80 = sadd.s32 0, 0
    %p81 = scmp.lt.s32.totalorder %s80, 0
    %s82 = scalar_select %p81, %s80, 0
    %s83 = smul.u32 8, %s82
    %s84 = ssub.s32 5, %s83
    %s85 = smul.u32 128, %s84
    %p86 = scmp.lt.s32.totalorder %s83, 4
    %s87 = scalar_select %p86, %s83, 4
    %s88 = smul.addr %s87, 8
    %s89 = scalar_lea.vmem %s1, %s88
    %s90 = sadd.s32 0, 0
    %p91 = scmp.lt.s32.totalorder %s90, 0
    %s92 = scalar_select %p91, %s90, 0
    %s93 = smul.u32 8, %s92
    %s94 = ssub.s32 5, %s93
    %s95 = smul.u32 128, %s94
    %p96 = scmp.eq.s32.totalorder 0, 0
    // Predicated region
    $region10: #{tpu_custom_call.1} parent=1 // pred_check
      %p97 = pneg %p96
    $region11: #{tpu_custom_call.1} parent=1 // pred_check_branch
      %99 = sbr.rel (%p97) target = $region13
    $region12: #{tpu_custom_call.1} parent=1 // pred_region
      %100 = vst [vmem:[#allocation2] sm:$0xff] 0.0
    $region13: #{tpu_custom_call.1} parent=1 // pred_fallthru
      _
    %v101 = vld [vmem:[%s73] sm:$0xff]
    %v102 = vld [vmem:[%s73 + $0x8] sm:$0xff]
    %v103 = vld [vmem:[%s73 + $0x10] sm:$0xff]
    %v104 = vld [vmem:[%s73 + $0x18] sm:$0xff]
    %v105 = vld [vmem:[%s73 + $0x20] sm:$0xff]
    %v106 = vld [vmem:[%s73 + $0x28] sm:$0xff]
    %v107 = vld [vmem:[%s73 + $0x30] sm:$0xff]
    %v108 = vld [vmem:[%s73 + $0x38] sm:$0xff]
    %v109 = vld [vmem:[%s89] sm:$0xff]
    %v110 = vld [vmem:[%s89 + $0x8] sm:$0xff]
    %v111 = vld [vmem:[%s89 + $0x10] sm:$0xff]
    %v112 = vld [vmem:[%s89 + $0x18] sm:$0xff]
    %v113 = vld [vmem:[%s89 + $0x20] sm:$0xff]
    %v114 = vld [vmem:[%s89 + $0x28] sm:$0xff]
    %v115 = vld [vmem:[%s89 + $0x30] sm:$0xff]
    %v116 = vld [vmem:[%s89 + $0x38] sm:$0xff]
    %vm117 = vcmp.ne.s32.totalorder %v109, 0
    %vm118 = vcmp.ne.s32.totalorder %v110, 0
    %vm119 = vcmp.ne.s32.totalorder %v111, 0
    %vm120 = vcmp.ne.s32.totalorder %v112, 0
    %vm121 = vcmp.ne.s32.totalorder %v113, 0
    %vm122 = vcmp.ne.s32.totalorder %v114, 0
    %vm123 = vcmp.ne.s32.totalorder %v115, 0
    %vm124 = vcmp.ne.s32.totalorder %v116, 0
    %v125 = vsub.f32 1.0, %v101
    %v126 = vsub.f32 1.0, %v102
    %v127 = vsub.f32 1.0, %v103
    %v128 = vsub.f32 1.0, %v104
    %v129 = vsub.f32 1.0, %v105
    %v130 = vsub.f32 1.0, %v106
    %v131 = vsub.f32 1.0, %v107
    %v132 = vsub.f32 1.0, %v108
    %v133 = vmax.f32 %v125, 0.0
    %v134 = vmax.f32 %v126, 0.0
    %v135 = vmax.f32 %v127, 0.0
    %v136 = vmax.f32 %v128, 0.0
    %v137 = vmax.f32 %v129, 0.0
    %v138 = vmax.f32 %v130, 0.0
    %v139 = vmax.f32 %v131, 0.0
    %v140 = vmax.f32 %v132, 0.0
    %v141 = vsel %vm117, %v101, %v133
    %v142 = vsel %vm118, %v102, %v134
    %v143 = vsel %vm119, %v103, %v135
    %v144 = vsel %vm120, %v104, %v136
    %v145 = vsel %vm121, %v105, %v137
    %v146 = vsel %vm122, %v106, %v138
    %v147 = vsel %vm123, %v107, %v139
    %v148 = vsel %vm124, %v108, %v140
    %v149 = vsel %vm117, 0.75, 0.375
    %v150 = vsel %vm118, 0.75, 0.375
    %v151 = vsel %vm119, 0.75, 0.375
    %v152 = vsel %vm120, 0.75, 0.375
    %v153 = vsel %vm121, 0.75, 0.375
    %v154 = vsel %vm122, 0.75, 0.375
    %v155 = vsel %vm123, 0.75, 0.375
    %v156 = vsel %vm124, 0.75, 0.375
    %v157 = vmul.f32 %v141, %v141
    %v158 = vmul.f32 %v142, %v142
    %v159 = vmul.f32 %v143, %v143
    %v160 = vmul.f32 %v144, %v144
    %v161 = vmul.f32 %v145, %v145
    %v162 = vmul.f32 %v146, %v146
    %v163 = vmul.f32 %v147, %v147
    %v164 = vmul.f32 %v148, %v148
    %v165 = vmul.f32 %v149, %v157
    %v166 = vmul.f32 %v150, %v158
    %v167 = vmul.f32 %v151, %v159
    %v168 = vmul.f32 %v152, %v160
    %v169 = vmul.f32 %v153, %v161
    %v170 = vmul.f32 %v154, %v162
    %v171 = vmul.f32 %v155, %v163
    %v172 = vmul.f32 %v156, %v164
    %s173 = sadd.s32 0, 0
    %s174 = sadd.s32 %s173, 1
    %s175 = smul.u32 %s174, 64
    %p176 = scmp.gt.s32.totalorder %s175, 40
    %p177 = scmp.le.s32.totalorder %s175, 40
    // Predicated region
    $region14: #{tpu_custom_call.1} parent=1 // pred_check
      %p178 = pneg %p177
    $region15: #{tpu_custom_call.1} parent=1 // pred_check_branch
      %180 = sbr.rel (%p178) target = $region17
    $region16: #{tpu_custom_call.1} parent=1 // pred_region
      %v181 = vld [vmem:[#allocation2] sm:$0xff]
      %v182 = vadd.f32 %v165, %v166
      %v183 = vadd.f32 %v182, %v167
      %v184 = vadd.f32 %v183, %v168
      %v185 = vadd.f32 %v184, %v169
      %v186 = vadd.f32 %v185, %v170
      %v187 = vadd.f32 %v186, %v171
      %v188 = vadd.f32 %v187, %v172
      %v189 = vadd.f32 %v181, %v188
      %190 = vst [vmem:[#allocation2] sm:$0xff] %v189
    $region17: #{tpu_custom_call.1} parent=1 // pred_fallthru
      _
    // Predicated region
    $region18: #{tpu_custom_call.1} parent=1 // pred_check
      %p191 = pneg %p176
    $region19: #{tpu_custom_call.1} parent=1 // pred_check_branch
      %193 = sbr.rel (%p191) target = $region21
    $region20: #{tpu_custom_call.1} parent=1 // pred_region
      %s194 = smul.u32 %s173, 64
      %v195 = vlaneseq
      %v196 = vshrl.u32 %v195, 7
      %v197 = vadd.s32 %v196, 8
      %v198 = vadd.s32 %v196, 16
      %v199 = vadd.s32 %v196, 24
      %v200 = vadd.s32 %v196, 32
      %v201 = vadd.s32 %v196, 40
      %v202 = vadd.s32 %v196, 48
      %v203 = vadd.s32 %v196, 56
      %v204 = vstv %s194
      %v205 = vadd.s32 %v204, %v196
      %v206 = vadd.s32 %v204, %v197
      %v207 = vadd.s32 %v204, %v198
      %v208 = vadd.s32 %v204, %v199
      %v209 = vadd.s32 %v204, %v200
      %v210 = vadd.s32 %v204, %v201
      %v211 = vadd.s32 %v204, %v202
      %v212 = vadd.s32 %v204, %v203
      %vm213 = vcmp.lt.s32.totalorder %v205, 40
      %vm214 = vcmp.lt.s32.totalorder %v206, 40
      %vm215 = vcmp.lt.s32.totalorder %v207, 40
      %vm216 = vcmp.lt.s32.totalorder %v208, 40
      %vm217 = vcmp.lt.s32.totalorder %v209, 40
      %vm218 = vcmp.lt.s32.totalorder %v210, 40
      %vm219 = vcmp.lt.s32.totalorder %v211, 40
      %vm220 = vcmp.lt.s32.totalorder %v212, 40
      %v221 = vsel %vm213, %v165, 0.0
      %v222 = vsel %vm214, %v166, 0.0
      %v223 = vsel %vm215, %v167, 0.0
      %v224 = vsel %vm216, %v168, 0.0
      %v225 = vsel %vm217, %v169, 0.0
      %v226 = vsel %vm218, %v170, 0.0
      %v227 = vsel %vm219, %v171, 0.0
      %v228 = vsel %vm220, %v172, 0.0
      %v229 = vld [vmem:[#allocation2] sm:$0xff]
      %v230 = vadd.f32 %v221, %v222
      %v231 = vadd.f32 %v230, %v223
      %v232 = vadd.f32 %v231, %v224
      %v233 = vadd.f32 %v232, %v225
      %v234 = vadd.f32 %v233, %v226
      %v235 = vadd.f32 %v234, %v227
      %v236 = vadd.f32 %v235, %v228
      %v237 = vadd.f32 %v229, %v236
      %238 = vst [vmem:[#allocation2] sm:$0xff] %v237
    $region21: #{tpu_custom_call.1} parent=1 // pred_fallthru
      _
    // Predicated region
    $region22: #{tpu_custom_call.1} parent=1 // pred_check
      _
    $region23: #{tpu_custom_call.1} parent=1 // pred_check_branch
      %240 = sbr.rel (0) target = $region25
    $region24: #{tpu_custom_call.1} parent=1 // pred_region
      %s242 = ssub.s32 128, 128
      %243 = vsyncadd [#allocation3], %s242
      %s245 = sshll.u32 [#allocation2], 4
      %s246 = int_to_ptr.vmem [resolvable:$true] %s245
      %248 = dma.vmem_to_hbm [thread:$0]  %s246, 128, %s2, [#allocation3]
    $region25: #{tpu_custom_call.1} parent=1 // pred_fallthru
      _
    // Predicated region
    $region26: #{tpu_custom_call.1} parent=1 // pred_check
      _
    $region27: #{tpu_custom_call.1} parent=1 // pred_check_branch
      %250 = sbr.rel (0) target = $region29
    $region28: #{tpu_custom_call.1} parent=1 // pred_region
      %251 = dma.done [#allocation3], 128
    $region29: #{tpu_custom_call.1} parent=1 // pred_fallthru
      _
    %252 = vsyncpa [#allocation3], 1

</llo_original>
